<compile_context>
chip_gen: v7x
topology: tpu7x:2x2x1
jax: 0.10.0
libtpu: 0.0.40
codegen_flags: <defaults>
</compile_context>

<pallas_src>
import math

import numpy as np
import jax
import jax.numpy as jnp
from jax.experimental import pallas as pl
from jax.experimental.pallas import tpu as pltpu


# ----------------------------------------------------------------------------
# Pallas kernel: FC_Decoder forward for one batch tile
# ----------------------------------------------------------------------------
def fc_decoder_kernel(x_ref, g_ref, gb_ref, m_ref, w1_ref, b1_ref,
                      w2_ref, b2_ref, w3_ref, b3_ref, out_ref):
    x = x_ref[...]                                                  # (TB, 6*Dh) f32

    # --- gate logits: pooling + all 5 tiny gate Linears folded into one small MXU pass.
    # logit columns: [ht, hm, hp, hf, hc, 0, 0, 0]
    logits = jnp.dot(x, g_ref[...], preferred_element_type=jnp.float32) + gb_ref[...]
    ht = logits[:, 0:1]
    hm = logits[:, 1:2]
    hp = logits[:, 2:3]
    hf = logits[:, 3:4]
    hc = logits[:, 4:5]

    # --- encoder-select softmax (transformer vs mamba)
    m_e = jnp.maximum(ht, hm)
    et = jnp.exp(ht - m_e)
    em = jnp.exp(hm - m_e)
    inv_e = pl.reciprocal(et + em, approx=False)   # exact: gates must sum to 1
    g_t = et * inv_e
    g_m = em * inv_e

    # --- aspect softmax (P / F / C)
    m_a = jnp.maximum(jnp.maximum(hp, hf), hc)
    ep = jnp.exp(hp - m_a)
    ef = jnp.exp(hf - m_a)
    ec = jnp.exp(hc - m_a)
    inv_a = pl.reciprocal(ep + ef + ec, approx=False)
    a_p = ep * inv_a
    a_f = ef * inv_a
    a_c = ec * inv_a

    # --- single wide gate + ONE broadcasted multiply of the hidden states.
    # mask rows: [encT, encM, aspP, aspF, aspC, 0, 0, 0], each (1, 6*Dh) of 0/1
    msk = m_ref[...]
    enc_w = g_t * msk[0:1, :] + g_m * msk[1:2, :]                   # (TB, 6*Dh)
    asp_w = a_p * msk[2:3, :] + a_f * msk[3:4, :] + a_c * msk[4:5, :]
    gated = x * (enc_w * asp_w)                                     # == sig_hs * hs, flat

    # --- 3-layer MLP head; layer 1 is one fused K = 6*Dh matmul
    h1 = jnp.dot(gated.astype(w1_ref.dtype), w1_ref[...],
                 preferred_element_type=jnp.float32) + b1_ref[...]
    h1 = jnp.maximum(h1, 0.0)                                       # ReLU (dropout1 = id)

    h2 = jnp.dot(h1.astype(w2_ref.dtype), w2_ref[...],
                 preferred_element_type=jnp.float32) + b2_ref[...]
    h2 = jax.nn.sigmoid(h2)                                         # Sigmoid (dropout2 = id)

    out_ref[...] = jnp.dot(h2.astype(w3_ref.dtype), w3_ref[...],
                           preferred_element_type=jnp.float32) + b3_ref[...]


# ----------------------------------------------------------------------------
# Wrapper: layout, padding, gate-parameter folding, pallas_call
# ----------------------------------------------------------------------------
def _round_up(x, m):
    return ((x + m - 1) // m) * m


def _pad2(a, rows, cols):
    r, c = a.shape
    return jnp.pad(a, ((0, rows - r), (0, cols - c)))


def fc_decoder_forward(hs, fc, *, matmul_dtype=jnp.float32):
    """hs: (6, B, Dh) — torch cat of the two pre-models along dim 0."""
    f32 = jnp.float32
    six, B, Dh = hs.shape
    assert six == 6
    K = 6 * Dh

    # torch: hs.permute(1, 0, 2) ... flatten(1) -> (B, 6*Dh), slot-major columns
    x = jnp.transpose(hs, (1, 0, 2)).astype(f32).reshape(B, K)

    # ---- batch tiling (grid axis) + sublane-aligned padding
    TB = min(128, _round_up(max(B, 1), 8))
    B_pad = _round_up(B, TB)
    x = jnp.pad(x, ((0, B_pad - B), (0, 0)))

    H1 = fc["w1"].shape[1]
    H2 = fc["w2"].shape[1]
    num_class = fc["w3"].shape[1]
    H1p = _round_up(H1, 128)
    H2p = _round_up(H2, 128)
    Np = _round_up(num_class, 128)

    # Zero padding keeps the real output columns exact: relu(0)=0 kills padded h1 lanes;
    # padded h2 lanes are sigmoid(0)=0.5 but hit zero rows of the padded w3.
    w1 = _pad2(fc["w1"].astype(f32), K, H1p).astype(matmul_dtype)
    b1 = _pad2(fc["b1"].astype(f32).reshape(1, H1), 1, H1p)
    w2 = _pad2(fc["w2"].astype(f32), H1p, H2p).astype(matmul_dtype)
    b2 = _pad2(fc["b2"].astype(f32).reshape(1, H2), 1, H2p)
    w3 = _pad2(fc["w3"].astype(f32), H2p, Np).astype(matmul_dtype)
    b3 = _pad2(fc["b3"].astype(f32).reshape(1, num_class), 1, Np)

    # ---- fold adaptive_avg_pool1d + the 5 gate Linears into ONE (K, 8) projection
    wt = fc["wt"].astype(f32).reshape(3)
    wm = fc["wm"].astype(f32).reshape(3)
    wp = fc["wp"].astype(f32).reshape(2)
    wf = fc["wf"].astype(f32).reshape(2)
    wc = fc["wc"].astype(f32).reshape(2)
    z3 = jnp.zeros((3,), f32)
    z6 = jnp.zeros((6,), f32)
    col_t = jnp.concatenate([wt, z3])                       # ht uses slots 0..2
    col_m = jnp.concatenate([z3, wm])                       # hm uses slots 3..5
    col_p = z6.at[0].set(wp[0]).at[3].set(wp[1])            # hp uses slots 0,3
    col_f = z6.at[1].set(wf[0]).at[4].set(wf[1])            # hf uses slots 1,4
    col_c = z6.at[2].set(wc[0]).at[5].set(wc[1])            # hc uses slots 2,5
    coeff = jnp.stack([col_t, col_m, col_p, col_f, col_c, z6, z6, z6], axis=1) / float(Dh)
    gproj = jnp.repeat(coeff, Dh, axis=0)                   # (K, 8)  (avg-pool folded in)
    zero = jnp.zeros((), f32)
    gbias = jnp.stack([fc["bt"].reshape(()), fc["bm"].reshape(()), fc["bp"].reshape(()),
                       fc["bf"].reshape(()), fc["bc"].reshape(()),
                       zero, zero, zero]).astype(f32).reshape(1, 8)

    # ---- static 0/1 slot masks: rows [encT, encM, aspP, aspF, aspC, 0, 0, 0]
    slot_masks = np.zeros((8, 6), np.float32)
    slot_masks[0, 0:3] = 1.0
    slot_masks[1, 3:6] = 1.0
    for a in range(3):
        slot_masks[2 + a, a] = 1.0
        slot_masks[2 + a, 3 + a] = 1.0
    masks = jnp.asarray(np.repeat(slot_masks, Dh, axis=1))  # (8, K)

    kargs = (x, gproj, gbias, masks, w1, b1, w2, b2, w3, b3)
    in_specs = [
        pl.BlockSpec((TB, K), lambda i: (i, 0)),            # batch-tiled activations
        pl.BlockSpec((K, 8), lambda i: (0, 0)),
        pl.BlockSpec((1, 8), lambda i: (0, 0)),
        pl.BlockSpec((8, K), lambda i: (0, 0)),
        pl.BlockSpec((K, H1p), lambda i: (0, 0)),
        pl.BlockSpec((1, H1p), lambda i: (0, 0)),
        pl.BlockSpec((H1p, H2p), lambda i: (0, 0)),
        pl.BlockSpec((1, H2p), lambda i: (0, 0)),
        pl.BlockSpec((H2p, Np), lambda i: (0, 0)),
        pl.BlockSpec((1, Np), lambda i: (0, 0)),
    ]
    out_spec = pl.BlockSpec((TB, Np), lambda i: (i, 0))

    # rough VMEM budget (weights + double-buffered activation/output tiles) with margin
    weight_bytes = sum(int(a.size) * a.dtype.itemsize for a in kargs[1:])
    tile_bytes = TB * (K + Np) * 4
    vmem_limit = int(min(64 * 1024 * 1024,
                         max(8 * 1024 * 1024, 4 * (weight_bytes + tile_bytes))))
    # NOTE: for very large Dh (w1 no longer VMEM-resident, esp. v7x's 64 MiB VMEM), add an
    # innermost "arbitrary" K grid axis streaming w1 in (TB,Kt)x(Kt,H1p) chunks into an
    # fp32 accumulator (pl.when init/finalize). Not needed at these sizes.

    out_pad = pl.pallas_call(
        fc_decoder_kernel,
        out_shape=jax.ShapeDtypeStruct((B_pad, Np), jnp.float32),
        grid=(B_pad // TB,),
        in_specs=in_specs,
        out_specs=out_spec,
        compiler_params=pltpu.CompilerParams(
            dimension_semantics=("parallel",),   # megacore sharding of batch tiles
            vmem_limit_bytes=vmem_limit,
        ),
    )(*kargs)

    return out_pad[:B, :num_class]


# ----------------------------------------------------------------------------
# Pre-model stand-ins + Predictor wrapper (plain-JAX glue)
# ----------------------------------------------------------------------------
def pre_model_stub(src, p):
    # TODO(synk): pre_model_transformer / pre_model_mamba are constructor-injected modules
    # not defined in the source; stand-in = linear reconstruction + 3 pooled hidden states.
    rec = jnp.einsum("sbd,de->sbe", src, p["w_rec"]) + p["b_rec"]          # (S, B, Dh)
    pooled = jnp.mean(src, axis=0)                                         # (B, Dh)
    hs = jnp.tanh(jnp.einsum("bd,kde->kbe", pooled, p["w_hs"])
                  + p["b_hs"][:, None, :])                                 # (3, B, Dh)
    return (rec,), hs


def predictor_forward(src, params, *, matmul_dtype=jnp.float32):
    rec_t, hs_t = pre_model_stub(src, params["trans"])
    rec_m, hs_m = pre_model_stub(src, params["mamba"])
    rec = list(rec_t) + list(rec_m)
    hs = jnp.concatenate([hs_t, hs_m], axis=0)                             # (6, B, Dh)
    out = fc_decoder_forward(hs, params["fc"], matmul_dtype=matmul_dtype)  # (B, num_class)
    return rec, out


# ----------------------------------------------------------------------------
# Pure-JAX reference (mirrors the torch FC_Decoder math) — for a self-check only
# ----------------------------------------------------------------------------
def fc_decoder_reference(hs, fc):
    hs_b = jnp.transpose(hs, (1, 0, 2)).astype(jnp.float32)                # (B, 6, Dh)
    B = hs_b.shape[0]
    avg = jnp.mean(hs_b, axis=2)                                           # (B, 6)
    h_t = avg[:, 0:3] @ fc["wt"].reshape(3, 1) + fc["bt"]
    h_m = avg[:, 3:6] @ fc["wm"].reshape(3, 1) + fc["bm"]
    enc = jax.nn.softmax(jnp.concatenate([h_t, h_m], axis=1), axis=1)
    h_p = jnp.stack([avg[:, 0], avg[:, 3]], axis=1) @ fc["wp"].reshape(2, 1) + fc["bp"]
    h_f = jnp.stack([avg[:, 1], avg[:, 4]], axis=1) @ fc["wf"].reshape(2, 1) + fc["bf"]
    h_c = jnp.stack([avg[:, 2], avg[:, 5]], axis=1) @ fc["wc"].reshape(2, 1) + fc["bc"]
    asp = jax.nn.softmax(jnp.concatenate([h_p, h_f, h_c], axis=1), axis=1)
    sig = jnp.concatenate([enc[:, 0:1] * asp, enc[:, 1:2] * asp], axis=1)  # (B, 6)
    gated = (sig[:, :, None] * hs_b).reshape(B, -1)
    h1 = jnp.maximum(gated @ fc["w1"] + fc["b1"], 0.0)
    h2 = jax.nn.sigmoid(h1 @ fc["w2"] + fc["b2"])
    return h2 @ fc["w3"] + fc["b3"]


def predictor_reference(src, params):
    _, hs_t = pre_model_stub(src, params["trans"])
    _, hs_m = pre_model_stub(src, params["mamba"])
    hs = jnp.concatenate([hs_t, hs_m], axis=0)
    return fc_decoder_reference(hs, params["fc"])


# ----------------------------------------------------------------------------
# Deterministic synthetic parameters (PyTorch-Linear-style bounds)
# ----------------------------------------------------------------------------
def _lin(key, fan_in, w_shape, b_shape):
    kw, kb = jax.random.split(key)
    bound = 1.0 / math.sqrt(fan_in)
    w = jax.random.uniform(kw, w_shape, jnp.float32, -bound, bound)
    b = jax.random.uniform(kb, b_shape, jnp.float32, -bound, bound)
    return w, b


def init_params(key, *, Dh, dim_feedforward, input_num, num_class):
    half = int(input_num / 2)                        # == 1 for input_num == 3
    H1 = dim_feedforward * half
    H2 = dim_feedforward // half
    assert 6 * Dh == dim_feedforward * input_num, "flattened hs must match Linear-1 fan-in"

    keys = jax.random.split(key, 10)
    wt, bt = _lin(keys[0], 3, (1, 3), (1,))
    wm, bm = _lin(keys[1], 3, (1, 3), (1,))
    wp, bp = _lin(keys[2], 2, (1, 2), (1,))
    wf, bf = _lin(keys[3], 2, (1, 2), (1,))
    wc, bc = _lin(keys[4], 2, (1, 2), (1,))
    # Linear weights stored transposed vs PyTorch: (in, out); w1 rows are slot-major,
    # matching hs.permute(1,0,2).flatten(1).
    w1, b1 = _lin(keys[5], 6 * Dh, (6 * Dh, H1), (H1,))
    w2, b2 = _lin(keys[6], H1, (H1, H2), (H2,))
    w3, b3 = _lin(keys[7], H2, (H2, num_class), (num_class,))
    fc = dict(wt=wt, bt=bt, wm=wm, bm=bm, wp=wp, bp=bp, wf=wf, bf=bf, wc=wc, bc=bc,
              w1=w1, b1=b1, w2=w2, b2=b2, w3=w3, b3=b3)

    def pre_params(k):
        k1, k2, k3, k4 = jax.random.split(k, 4)
        return dict(
            w_rec=0.1 * jax.random.normal(k1, (Dh, Dh), jnp.float32),
            b_rec=0.1 * jax.random.normal(k2, (Dh,), jnp.float32),
            w_hs=0.1 * jax.random.normal(k3, (3, Dh, Dh), jnp.float32),
            b_hs=0.1 * jax.random.normal(k4, (3, Dh), jnp.float32),
        )

    return dict(fc=fc, trans=pre_params(keys[8]), mamba=pre_params(keys[9]))


# ----------------------------------------------------------------------------
if __name__ == "__main__":
    B, S, Dh = 2, 8, 32
    dim_feedforward, input_num, num_class = 64, 3, 5   # 6*Dh == dim_feedforward*input_num

    key = jax.random.PRNGKey(0)
    k_src, k_par = jax.random.split(key)
    src = jax.random.normal(k_src, (S, B, Dh), jnp.float32)
    params = init_params(k_par, Dh=Dh, dim_feedforward=dim_feedforward,
                         input_num=input_num, num_class=num_class)

    rec, out = jax.jit(predictor_forward)(src, params)
    out = jax.block_until_ready(out)
    for r in rec:
        jax.block_until_ready(r)

    assert out.shape == (B, num_class)
    assert len(rec) == 2 and rec[0].shape == (S, B, Dh)
    assert bool(jnp.all(jnp.isfinite(out)))

    # correctness self-check against a pure-JAX reference of the same math
    ref_out = jax.block_until_ready(predictor_reference(src, params))
    max_err = float(jnp.max(jnp.abs(out - ref_out)))
    assert bool(jnp.allclose(out, ref_out, rtol=2e-3, atol=2e-3)), max_err

    print("KERNEL_OK")
</pallas_src>

<mosaic_0001>
module attributes {stable_mosaic.version = 11 : i64} {
  func.func @fc_decoder_kernel(%arg0: i32, %arg1: memref<8x192xf32, #tpu.memory_space<vmem>>, %arg2: memref<192x8xf32, #tpu.memory_space<vmem>>, %arg3: memref<1x8xf32, #tpu.memory_space<vmem>>, %arg4: memref<8x192xf32, #tpu.memory_space<vmem>>, %arg5: memref<192x128xf32, #tpu.memory_space<vmem>>, %arg6: memref<1x128xf32, #tpu.memory_space<vmem>>, %arg7: memref<128x128xf32, #tpu.memory_space<vmem>>, %arg8: memref<1x128xf32, #tpu.memory_space<vmem>>, %arg9: memref<128x128xf32, #tpu.memory_space<vmem>>, %arg10: memref<1x128xf32, #tpu.memory_space<vmem>>, %arg11: memref<8x128xf32, #tpu.memory_space<vmem>>) attributes {dimension_semantics = [#tpu.dimension_semantics<parallel>], iteration_bounds = array<i64: 1>, scalar_prefetch = 0 : i64, scratch_operands = 0 : i64, tpu.core_type = #tpu.core_type<tc>, window_params = [{transform_indices = @transform_0, window_bounds = array<i64: 8, 192>}, {pipeline_mode = #tpu.pipeline_mode<synchronous>, transform_indices = @transform_1, window_bounds = array<i64: 192, 8>}, {pipeline_mode = #tpu.pipeline_mode<synchronous>, transform_indices = @transform_2, window_bounds = array<i64: 1, 8>}, {pipeline_mode = #tpu.pipeline_mode<synchronous>, transform_indices = @transform_3, window_bounds = array<i64: 8, 192>}, {pipeline_mode = #tpu.pipeline_mode<synchronous>, transform_indices = @transform_4, window_bounds = array<i64: 192, 128>}, {pipeline_mode = #tpu.pipeline_mode<synchronous>, transform_indices = @transform_5, window_bounds = array<i64: 1, 128>}, {pipeline_mode = #tpu.pipeline_mode<synchronous>, transform_indices = @transform_6, window_bounds = array<i64: 128, 128>}, {pipeline_mode = #tpu.pipeline_mode<synchronous>, transform_indices = @transform_7, window_bounds = array<i64: 1, 128>}, {pipeline_mode = #tpu.pipeline_mode<synchronous>, transform_indices = @transform_8, window_bounds = array<i64: 128, 128>}, {pipeline_mode = #tpu.pipeline_mode<synchronous>, transform_indices = @transform_9, window_bounds = array<i64: 1, 128>}, {transform_indices = @transform_10, window_bounds = array<i64: 8, 128>}]} {
    %c0 = arith.constant 0 : index
    %c0_0 = arith.constant 0 : index
    %0 = vector.load %arg1[%c0, %c0_0] : memref<8x192xf32, #tpu.memory_space<vmem>>, vector<8x192xf32>
    %c0_1 = arith.constant 0 : index
    %c0_2 = arith.constant 0 : index
    %1 = vector.load %arg2[%c0_1, %c0_2] : memref<192x8xf32, #tpu.memory_space<vmem>>, vector<192x8xf32>
    %cst = arith.constant dense<0.000000e+00> : vector<8x8xf32>
    %2 = tpu.matmul %0, %1, %cst {dimension_numbers = #tpu.dot_dimension_numbers<[1], [0], [0], [1], [0, 0, 1, 1], [], []>} : vector<8x192xf32>, vector<192x8xf32>, vector<8x8xf32> -> vector<8x8xf32>
    %c0_3 = arith.constant 0 : index
    %c0_4 = arith.constant 0 : index
    %3 = vector.load %arg3[%c0_3, %c0_4] : memref<1x8xf32, #tpu.memory_space<vmem>>, vector<1x8xf32>
    %4 = vector.broadcast %3 : vector<1x8xf32> to vector<8x8xf32>
    %5 = arith.addf %2, %4 : vector<8x8xf32>
    %6 = vector.extract_strided_slice %5 {offsets = [0, 0], sizes = [8, 1], strides = [1, 1]} : vector<8x8xf32> to vector<8x1xf32>
    %7 = vector.extract_strided_slice %5 {offsets = [0, 1], sizes = [8, 1], strides = [1, 1]} : vector<8x8xf32> to vector<8x1xf32>
    %8 = vector.extract_strided_slice %5 {offsets = [0, 2], sizes = [8, 1], strides = [1, 1]} : vector<8x8xf32> to vector<8x1xf32>
    %9 = vector.extract_strided_slice %5 {offsets = [0, 3], sizes = [8, 1], strides = [1, 1]} : vector<8x8xf32> to vector<8x1xf32>
    %10 = vector.extract_strided_slice %5 {offsets = [0, 4], sizes = [8, 1], strides = [1, 1]} : vector<8x8xf32> to vector<8x1xf32>
    %11 = arith.maximumf %6, %7 : vector<8x1xf32>
    %12 = arith.subf %6, %11 : vector<8x1xf32>
    %13 = math.exp %12 : vector<8x1xf32>
    %14 = arith.subf %7, %11 : vector<8x1xf32>
    %15 = math.exp %14 : vector<8x1xf32>
    %16 = arith.addf %13, %15 : vector<8x1xf32>
    %17 = tpu.reciprocal %16 : vector<8x1xf32> -> vector<8x1xf32>
    %18 = arith.mulf %13, %17 : vector<8x1xf32>
    %19 = arith.mulf %15, %17 : vector<8x1xf32>
    %20 = arith.maximumf %8, %9 : vector<8x1xf32>
    %21 = arith.maximumf %20, %10 : vector<8x1xf32>
    %22 = arith.subf %8, %21 : vector<8x1xf32>
    %23 = math.exp %22 : vector<8x1xf32>
    %24 = arith.subf %9, %21 : vector<8x1xf32>
    %25 = math.exp %24 : vector<8x1xf32>
    %26 = arith.subf %10, %21 : vector<8x1xf32>
    %27 = math.exp %26 : vector<8x1xf32>
    %28 = arith.addf %23, %25 : vector<8x1xf32>
    %29 = arith.addf %28, %27 : vector<8x1xf32>
    %30 = tpu.reciprocal %29 : vector<8x1xf32> -> vector<8x1xf32>
    %31 = arith.mulf %23, %30 : vector<8x1xf32>
    %32 = arith.mulf %25, %30 : vector<8x1xf32>
    %33 = arith.mulf %27, %30 : vector<8x1xf32>
    %c0_5 = arith.constant 0 : index
    %c0_6 = arith.constant 0 : index
    %34 = vector.load %arg4[%c0_5, %c0_6] : memref<8x192xf32, #tpu.memory_space<vmem>>, vector<8x192xf32>
    %35 = vector.extract_strided_slice %34 {offsets = [0, 0], sizes = [1, 192], strides = [1, 1]} : vector<8x192xf32> to vector<1x192xf32>
    %36 = vector.broadcast %18 : vector<8x1xf32> to vector<8x192xf32>
    %37 = vector.broadcast %35 : vector<1x192xf32> to vector<8x192xf32>
    %38 = arith.mulf %36, %37 : vector<8x192xf32>
    %39 = vector.extract_strided_slice %34 {offsets = [1, 0], sizes = [1, 192], strides = [1, 1]} : vector<8x192xf32> to vector<1x192xf32>
    %40 = vector.broadcast %19 : vector<8x1xf32> to vector<8x192xf32>
    %41 = vector.broadcast %39 : vector<1x192xf32> to vector<8x192xf32>
    %42 = arith.mulf %40, %41 : vector<8x192xf32>
    %43 = arith.addf %38, %42 : vector<8x192xf32>
    %44 = vector.extract_strided_slice %34 {offsets = [2, 0], sizes = [1, 192], strides = [1, 1]} : vector<8x192xf32> to vector<1x192xf32>
    %45 = vector.broadcast %31 : vector<8x1xf32> to vector<8x192xf32>
    %46 = vector.broadcast %44 : vector<1x192xf32> to vector<8x192xf32>
    %47 = arith.mulf %45, %46 : vector<8x192xf32>
    %48 = vector.extract_strided_slice %34 {offsets = [3, 0], sizes = [1, 192], strides = [1, 1]} : vector<8x192xf32> to vector<1x192xf32>
    %49 = vector.broadcast %32 : vector<8x1xf32> to vector<8x192xf32>
    %50 = vector.broadcast %48 : vector<1x192xf32> to vector<8x192xf32>
    %51 = arith.mulf %49, %50 : vector<8x192xf32>
    %52 = arith.addf %47, %51 : vector<8x192xf32>
    %53 = vector.extract_strided_slice %34 {offsets = [4, 0], sizes = [1, 192], strides = [1, 1]} : vector<8x192xf32> to vector<1x192xf32>
    %54 = vector.broadcast %33 : vector<8x1xf32> to vector<8x192xf32>
    %55 = vector.broadcast %53 : vector<1x192xf32> to vector<8x192xf32>
    %56 = arith.mulf %54, %55 : vector<8x192xf32>
    %57 = arith.addf %52, %56 : vector<8x192xf32>
    %58 = arith.mulf %43, %57 : vector<8x192xf32>
    %59 = arith.mulf %0, %58 : vector<8x192xf32>
    %c0_7 = arith.constant 0 : index
    %c0_8 = arith.constant 0 : index
    %60 = vector.load %arg5[%c0_7, %c0_8] : memref<192x128xf32, #tpu.memory_space<vmem>>, vector<192x128xf32>
    %cst_9 = arith.constant dense<0.000000e+00> : vector<8x128xf32>
    %61 = tpu.matmul %59, %60, %cst_9 {dimension_numbers = #tpu.dot_dimension_numbers<[1], [0], [0], [1], [0, 0, 1, 1], [], []>} : vector<8x192xf32>, vector<192x128xf32>, vector<8x128xf32> -> vector<8x128xf32>
    %c0_10 = arith.constant 0 : index
    %c0_11 = arith.constant 0 : index
    %62 = vector.load %arg6[%c0_10, %c0_11] : memref<1x128xf32, #tpu.memory_space<vmem>>, vector<1x128xf32>
    %63 = vector.broadcast %62 : vector<1x128xf32> to vector<8x128xf32>
    %64 = arith.addf %61, %63 : vector<8x128xf32>
    %cst_12 = arith.constant 0.000000e+00 : f32
    %65 = vector.broadcast %cst_12 : f32 to vector<8x128xf32>
    %66 = arith.maximumf %64, %65 : vector<8x128xf32>
    %c0_13 = arith.constant 0 : index
    %c0_14 = arith.constant 0 : index
    %67 = vector.load %arg7[%c0_13, %c0_14] : memref<128x128xf32, #tpu.memory_space<vmem>>, vector<128x128xf32>
    %cst_15 = arith.constant dense<0.000000e+00> : vector<8x128xf32>
    %68 = tpu.matmul %66, %67, %cst_15 {dimension_numbers = #tpu.dot_dimension_numbers<[1], [0], [0], [1], [0, 0, 1, 1], [], []>} : vector<8x128xf32>, vector<128x128xf32>, vector<8x128xf32> -> vector<8x128xf32>
    %c0_16 = arith.constant 0 : index
    %c0_17 = arith.constant 0 : index
    %69 = vector.load %arg8[%c0_16, %c0_17] : memref<1x128xf32, #tpu.memory_space<vmem>>, vector<1x128xf32>
    %70 = vector.broadcast %69 : vector<1x128xf32> to vector<8x128xf32>
    %71 = arith.addf %68, %70 : vector<8x128xf32>
    %72 = arith.negf %71 : vector<8x128xf32>
    %73 = math.exp %72 : vector<8x128xf32>
    %cst_18 = arith.constant 1.000000e+00 : f32
    %74 = vector.broadcast %cst_18 : f32 to vector<8x128xf32>
    %75 = arith.addf %74, %73 : vector<8x128xf32>
    %76 = arith.divf %74, %75 : vector<8x128xf32>
    %c0_19 = arith.constant 0 : index
    %c0_20 = arith.constant 0 : index
    %77 = vector.load %arg9[%c0_19, %c0_20] : memref<128x128xf32, #tpu.memory_space<vmem>>, vector<128x128xf32>
    %cst_21 = arith.constant dense<0.000000e+00> : vector<8x128xf32>
    %78 = tpu.matmul %76, %77, %cst_21 {dimension_numbers = #tpu.dot_dimension_numbers<[1], [0], [0], [1], [0, 0, 1, 1], [], []>} : vector<8x128xf32>, vector<128x128xf32>, vector<8x128xf32> -> vector<8x128xf32>
    %c0_22 = arith.constant 0 : index
    %c0_23 = arith.constant 0 : index
    %79 = vector.load %arg10[%c0_22, %c0_23] : memref<1x128xf32, #tpu.memory_space<vmem>>, vector<1x128xf32>
    %80 = vector.broadcast %79 : vector<1x128xf32> to vector<8x128xf32>
    %81 = arith.addf %78, %80 : vector<8x128xf32>
    %c0_24 = arith.constant 0 : index
    %c0_25 = arith.constant 0 : index
    %82 = vector.load %arg11[%c0_24, %c0_25] : memref<8x128xf32, #tpu.memory_space<vmem>>, vector<8x128xf32>
    tpu.vector_store %arg11[%c0_24, %c0_25], %81 {strides = array<i32>} : memref<8x128xf32, #tpu.memory_space<vmem>>, vector<8x128xf32>,
    return
  }
  func.func @transform_0(%arg0: i32) -> (i32, i32) {
    %c0_i32 = arith.constant 0 : i32
    %c0_i32_0 = arith.constant 0 : i32
    return %arg0, %c0_i32 : i32, i32
  }
  func.func @transform_1(%arg0: i32) -> (i32, i32) {
    %c0_i32 = arith.constant 0 : i32
    %c0_i32_0 = arith.constant 0 : i32
    %c0_i32_1 = arith.constant 0 : i32
    return %c0_i32, %c0_i32_0 : i32, i32
  }
  func.func @transform_2(%arg0: i32) -> (i32, i32) {
    %c0_i32 = arith.constant 0 : i32
    %c0_i32_0 = arith.constant 0 : i32
    %c0_i32_1 = arith.constant 0 : i32
    return %c0_i32, %c0_i32_0 : i32, i32
  }
  func.func @transform_3(%arg0: i32) -> (i32, i32) {
    %c0_i32 = arith.constant 0 : i32
    %c0_i32_0 = arith.constant 0 : i32
    %c0_i32_1 = arith.constant 0 : i32
    return %c0_i32, %c0_i32_0 : i32, i32
  }
  func.func @transform_4(%arg0: i32) -> (i32, i32) {
    %c0_i32 = arith.constant 0 : i32
    %c0_i32_0 = arith.constant 0 : i32
    %c0_i32_1 = arith.constant 0 : i32
    return %c0_i32, %c0_i32_0 : i32, i32
  }
  func.func @transform_5(%arg0: i32) -> (i32, i32) {
    %c0_i32 = arith.constant 0 : i32
    %c0_i32_0 = arith.constant 0 : i32
    %c0_i32_1 = arith.constant 0 : i32
    return %c0_i32, %c0_i32_0 : i32, i32
  }
  func.func @transform_6(%arg0: i32) -> (i32, i32) {
    %c0_i32 = arith.constant 0 : i32
    %c0_i32_0 = arith.constant 0 : i32
    %c0_i32_1 = arith.constant 0 : i32
    return %c0_i32, %c0_i32_0 : i32, i32
  }
  func.func @transform_7(%arg0: i32) -> (i32, i32) {
    %c0_i32 = arith.constant 0 : i32
    %c0_i32_0 = arith.constant 0 : i32
    %c0_i32_1 = arith.constant 0 : i32
    return %c0_i32, %c0_i32_0 : i32, i32
  }
  func.func @transform_8(%arg0: i32) -> (i32, i32) {
    %c0_i32 = arith.constant 0 : i32
    %c0_i32_0 = arith.constant 0 : i32
    %c0_i32_1 = arith.constant 0 : i32
    return %c0_i32, %c0_i32_0 : i32, i32
  }
  func.func @transform_9(%arg0: i32) -> (i32, i32) {
    %c0_i32 = arith.constant 0 : i32
    %c0_i32_0 = arith.constant 0 : i32
    %c0_i32_1 = arith.constant 0 : i32
    return %c0_i32, %c0_i32_0 : i32, i32
  }
  func.func @transform_10(%arg0: i32) -> (i32, i32) {
    %c0_i32 = arith.constant 0 : i32
    %c0_i32_0 = arith.constant 0 : i32
    return %arg0, %c0_i32 : i32, i32
  }
}

</mosaic_0001>

<llo_original>
// kernel: predictor_forward.1
$region0: #{predictor_forward.1}
  #allocation0 [shape = 'u32[]', space=smem, size = 0x4, offset = 0x4, fixed_abs, tag = 'smem constant byte address 0x4 - core index']
  #allocation1 [shape = 'u32[144,128]{1,0:T(1,128)}', space=vmem, size = 0x12000, scoped, tag = 'internal scratch']
  %s0 = inlined_call_operand.vmem [shape: f32[8,192], index: 0, kind: input, shape index: {}]
  %s1 = inlined_call_operand.vmem [shape: f32[192,8], index: 1, kind: input, shape index: {}]
  %s2 = inlined_call_operand.vmem [shape: f32[1,8], index: 2, kind: input, shape index: {}]
  %s3 = inlined_call_operand.vmem [shape: f32[8,192], index: 3, kind: input, shape index: {}]
  %s4 = inlined_call_operand.vmem [shape: f32[192,128], index: 4, kind: input, shape index: {}]
  %s5 = inlined_call_operand.vmem [shape: f32[1,128], index: 5, kind: input, shape index: {}]
  %s6 = inlined_call_operand.vmem [shape: f32[128,128], index: 6, kind: input, shape index: {}]
  %s7 = inlined_call_operand.vmem [shape: f32[1,128], index: 7, kind: input, shape index: {}]
  %s8 = inlined_call_operand.vmem [shape: f32[128,128], index: 8, kind: input, shape index: {}]
  %s9 = inlined_call_operand.vmem [shape: f32[1,128], index: 9, kind: input, shape index: {}]
  %s10 = inlined_call_operand.vmem [shape: f32[8,128], index: 10, kind: output, shape index: {}]
  %s11 = sld [smem:[#allocation0]]
  $region50: #{predictor_forward.1} parent=0
    _
  %s13 = ssub.s32 1, %s11
  %s14 = scalar_select 0, %s13, %s11
  // Predicated region
  $region2: #{predictor_forward.1} parent=0 // pred_check
    _
  $region3: #{predictor_forward.1} parent=0 // pred_check_branch
    %16 = sbr.rel (0) target = $region5
  $region4: #{predictor_forward.1} parent=0 // pred_region
    _
  $region5: #{predictor_forward.1} parent=0 // pred_fallthru
    _
  // Predicated region
  $region6: #{predictor_forward.1} parent=0 // pred_check
    _
  $region7: #{predictor_forward.1} parent=0 // pred_check_branch
    %18 = sbr.rel (0) target = $region9
  $region8: #{predictor_forward.1} parent=0 // pred_region
    _
  $region9: #{predictor_forward.1} parent=0 // pred_fallthru
    _
  // Predicated region
  $region10: #{predictor_forward.1} parent=0 // pred_check
    _
  $region11: #{predictor_forward.1} parent=0 // pred_check_branch
    %20 = sbr.rel (0) target = $region13
  $region12: #{predictor_forward.1} parent=0 // pred_region
    _
  $region13: #{predictor_forward.1} parent=0 // pred_fallthru
    _
  // Predicated region
  $region14: #{predictor_forward.1} parent=0 // pred_check
    _
  $region15: #{predictor_forward.1} parent=0 // pred_check_branch
    %22 = sbr.rel (0) target = $region17
  $region16: #{predictor_forward.1} parent=0 // pred_region
    _
  $region17: #{predictor_forward.1} parent=0 // pred_fallthru
    _
  // Predicated region
  $region18: #{predictor_forward.1} parent=0 // pred_check
    _
  $region19: #{predictor_forward.1} parent=0 // pred_check_branch
    %24 = sbr.rel (0) target = $region21
  $region20: #{predictor_forward.1} parent=0 // pred_region
    _
  $region21: #{predictor_forward.1} parent=0 // pred_fallthru
    _
  // Predicated region
  $region22: #{predictor_forward.1} parent=0 // pred_check
    _
  $region23: #{predictor_forward.1} parent=0 // pred_check_branch
    %26 = sbr.rel (0) target = $region25
  $region24: #{predictor_forward.1} parent=0 // pred_region
    _
  $region25: #{predictor_forward.1} parent=0 // pred_fallthru
    _
  // Predicated region
  $region26: #{predictor_forward.1} parent=0 // pred_check
    _
  $region27: #{predictor_forward.1} parent=0 // pred_check_branch
    %28 = sbr.rel (0) target = $region29
  $region28: #{predictor_forward.1} parent=0 // pred_region
    _
  $region29: #{predictor_forward.1} parent=0 // pred_fallthru
    _
  // Predicated region
  $region30: #{predictor_forward.1} parent=0 // pred_check
    _
  $region31: #{predictor_forward.1} parent=0 // pred_check_branch
    %30 = sbr.rel (0) target = $region33
  $region32: #{predictor_forward.1} parent=0 // pred_region
    _
  $region33: #{predictor_forward.1} parent=0 // pred_fallthru
    _
  // Predicated region
  $region34: #{predictor_forward.1} parent=0 // pred_check
    _
  $region35: #{predictor_forward.1} parent=0 // pred_check_branch
    %32 = sbr.rel (0) target = $region37
  $region36: #{predictor_forward.1} parent=0 // pred_region
    _
  $region37: #{predictor_forward.1} parent=0 // pred_fallthru
    _
  // Predicated region
  $region38: #{predictor_forward.1} parent=0 // pred_check
    _
  $region39: #{predictor_forward.1} parent=0 // pred_check_branch
    %34 = sbr.rel (0) target = $region41
  $region40: #{predictor_forward.1} parent=0 // pred_region
    _
  $region41: #{predictor_forward.1} parent=0 // pred_fallthru
    _
  %v35 = vld [vmem:[%s0] sm:$0xff]
  %v36 = vld [vmem:[%s0 + $0x8] sm:$0xff]
  %v37 = vld [vmem:[%s1] sm:$0xff]
  %v38 = vld [vmem:[%s1 + $0x8] sm:$0xff]
  %v39 = vld [vmem:[%s1 + $0x10] sm:$0xff]
  %v40 = vld [vmem:[%s1 + $0x18] sm:$0xff]
  %v41 = vld [vmem:[%s1 + $0x20] sm:$0xff]
  %v42 = vld [vmem:[%s1 + $0x28] sm:$0xff]
  %v43 = vld [vmem:[%s1 + $0x30] sm:$0xff]
  %v44 = vld [vmem:[%s1 + $0x38] sm:$0xff]
  %v45 = vld [vmem:[%s1 + $0x40] sm:$0xff]
  %v46 = vld [vmem:[%s1 + $0x48] sm:$0xff]
  %v47 = vld [vmem:[%s1 + $0x50] sm:$0xff]
  %v48 = vld [vmem:[%s1 + $0x58] sm:$0xff]
  %v49 = vld [vmem:[%s1 + $0x60] sm:$0xff]
  %v50 = vld [vmem:[%s1 + $0x68] sm:$0xff]
  %v51 = vld [vmem:[%s1 + $0x70] sm:$0xff]
  %v52 = vld [vmem:[%s1 + $0x78] sm:$0xff]
  %v53 = vld [vmem:[%s1 + $0x80] sm:$0xff]
  %v54 = vld [vmem:[%s1 + $0x88] sm:$0xff]
  %v55 = vld [vmem:[%s1 + $0x90] sm:$0xff]
  %v56 = vld [vmem:[%s1 + $0x98] sm:$0xff]
  %v57 = vld [vmem:[%s1 + $0xa0] sm:$0xff]
  %v58 = vld [vmem:[%s1 + $0xa8] sm:$0xff]
  %v59 = vld [vmem:[%s1 + $0xb0] sm:$0xff]
  %v60 = vld [vmem:[%s1 + $0xb8] sm:$0xff]
  %v61 = vld [vmem:[%s2] sm:$0x1]
  %v63 = vlaneseq
  %v64 = vshrl.u32 %v63, 7
  %v65 = vsub.s32 0, %v64
  %v66 = vrot.slane %v61, %v65
  %vm68 = vcmask 523264
  %v70 = vsel %vm68, %v36, 0
  %72 = vmatprep.subr.mxu0 0.0
  %73 = vmatpush1.msra.mxu0 %v37
  %74 = vmatprep.subr.mxu0 0.0
  %75 = vmatpush1.msra.mxu0 %v38
  %76 = vmatprep.subr.mxu0 0.0
  %77 = vmatpush1.msra.mxu0 %v39
  %78 = vmatprep.subr.mxu0 0.0
  %79 = vmatpush1.msra.mxu0 %v40
  %80 = vmatprep.subr.mxu0 0.0
  %81 = vmatpush1.msra.mxu0 %v41
  %82 = vmatprep.subr.mxu0 0.0
  %83 = vmatpush1.msra.mxu0 %v42
  %84 = vmatprep.subr.mxu0 0.0
  %85 = vmatpush1.msra.mxu0 %v43
  %86 = vmatprep.subr.mxu0 0.0
  %87 = vmatpush1.msra.mxu0 %v44
  %88 = vmatprep.subr.mxu0 0.0
  %89 = vmatpush1.msra.mxu0 %v45
  %90 = vmatprep.subr.mxu0 0.0
  %91 = vmatpush1.msra.mxu0 %v46
  %92 = vmatprep.subr.mxu0 0.0
  %93 = vmatpush1.msra.mxu0 %v47
  %94 = vmatprep.subr.mxu0 0.0
  %95 = vmatpush1.msra.mxu0 %v48
  %96 = vmatprep.subr.mxu0 0.0
  %97 = vmatpush1.msra.mxu0 %v49
  %98 = vmatprep.subr.mxu0 0.0
  %99 = vmatpush1.msra.mxu0 %v50
  %100 = vmatprep.subr.mxu0 0.0
  %101 = vmatpush1.msra.mxu0 %v51
  %102 = vmatprep.subr.mxu0 0.0
  %103 = vmatpush1.msra.mxu0 %v52
  %104 = vmatprep.subr.mxu0 0.0
  %105 = vmatpush1.msra.mxu0 %v53
  %106 = vmatprep.subr.mxu0 0.0
  %107 = vmatpush1.msra.mxu0 %v54
  %108 = vmatprep.subr.mxu0 0.0
  %109 = vmatpush1.msra.mxu0 %v55
  %110 = vmatprep.subr.mxu0 0.0
  %111 = vmatpush1.msra.mxu0 %v56
  %112 = vmatprep.subr.mxu0 0.0
  %113 = vmatpush1.msra.mxu0 %v57
  %114 = vmatprep.subr.mxu0 0.0
  %115 = vmatpush1.msra.mxu0 %v58
  %116 = vmatprep.subr.mxu0 0.0
  %117 = vmatpush1.msra.mxu0 %v59
  %118 = vmatprep.subr.mxu0 0.0
  %119 = vmatpush1.msra.mxu0 %v60
  %120 = vmatprep.subr.mxu0 0.0
  %121 = vmatpush1.msra.mxu0 0.0
  %122 = vmatprep.subr.mxu0 0.0
  %123 = vmatpush1.msra.mxu0 0.0
  %124 = vmatprep.subr.mxu0 0.0
  %125 = vmatpush1.msra.mxu0 0.0
  %126 = vmatprep.subr.mxu0 0.0
  %127 = vmatpush1.msra.mxu0 0.0
  %128 = vmatprep.subr.mxu0 0.0
  %129 = vmatpush1.msra.mxu0 0.0
  %130 = vmatprep.subr.mxu0 0.0
  %131 = vmatpush1.msra.mxu0 0.0
  %132 = vmatprep.subr.mxu0 0.0
  %133 = vmatpush1.msra.mxu0 0.0
  %134 = vmatprep.subr.mxu0 0.0
  %135 = vmatpush1.msra.mxu0 0.0
  %136 = vmatprep.mubr.f32.mxu0 %v70
  %137 = vmatmul.mubr.f32.gmra.mrb[0].mxu0 %v35
  %v138 = vpop.f32.mrb[0].mxu0
  %v139 = vadd.f32 %v66, %v138
  %v140 = vpop.f32.mrb[0].mxu0
  %141 = vdwg.mxu0
  %143 = vrot.lane.b32.xlu0 %v139, 127
  %v144 = vpop.permute.xlu0 %143
  %v146 = vmax.f32 %v139, %v144
  %v147 = vsub.f32 %v139, %v146
  %v148 = vmul.f32 %v147, 1.442695
  %v149 = vpow.pop %v148
  %151 = vrot.lane.b32.xlu0 %v146, 1
  %v152 = vpop.permute.xlu0 %151
  %v154 = vsub.f32 %v139, %v152
  %v155 = vmul.f32 %v154, 1.442695
  %v156 = vpow.pop %v155
  %158 = vrot.lane.b32.xlu0 %v156, 127
  %v159 = vpop.permute.xlu0 %158
  %v161 = vadd.f32 %v149, %v159
  %v162 = vrcp.pop %v161
  %v163 = vmul.f32 %v149, %v162
  %165 = vrot.lane.b32.xlu0 %v162, 1
  %v166 = vpop.permute.xlu0 %165
  %v168 = vmul.f32 %v156, %v166
  %169 = vrot.lane.b32.xlu0 %v139, 126
  %v170 = vpop.permute.xlu0 %169
  %v172 = vmax.f32 %v146, %v170
  %v173 = vsub.f32 %v139, %v172
  %v174 = vmul.f32 %v173, 1.442695
  %v175 = vpow.pop %v174
  %177 = vrot.lane.b32.xlu0 %v172, 1
  %v178 = vpop.permute.xlu0 %177
  %v180 = vsub.f32 %v139, %v178
  %v181 = vmul.f32 %v180, 1.442695
  %v182 = vpow.pop %v181
  %183 = vrot.lane.b32.xlu0 %v172, 2
  %v184 = vpop.permute.xlu0 %183
  %v186 = vsub.f32 %v139, %v184
  %v187 = vmul.f32 %v186, 1.442695
  %v188 = vpow.pop %v187
  %190 = vrot.lane.b32.xlu0 %v182, 127
  %v191 = vpop.permute.xlu0 %190
  %v193 = vadd.f32 %v175, %v191
  %195 = vrot.lane.b32.xlu0 %v188, 126
  %v196 = vpop.permute.xlu0 %195
  %v198 = vadd.f32 %v193, %v196
  %v199 = vrcp.pop %v198
  %v200 = vmul.f32 %v175, %v199
  %202 = vrot.lane.b32.xlu0 %v199, 1
  %v203 = vpop.permute.xlu0 %202
  %v205 = vmul.f32 %v182, %v203
  %206 = vrot.lane.b32.xlu0 %v199, 2
  %v207 = vpop.permute.xlu0 %206
  %v209 = vmul.f32 %v188, %v207
  %v210 = vld [vmem:[%s3] sm:$0xff]
  %v211 = vld [vmem:[%s3 + $0x8] sm:$0xff]
  %213 = vset.pattern.permute.xlu0 0
  %214 = vperm.xlu0 %213, %v163
  %v215 = vpop.permute.xlu0 %214
  %v217 = vlaneseq
  %v218 = vshrl.u32 %v217, 7
  %v219 = vsub.s32 0, %v218
  %v220 = vrot.slane %v210, %v219
  %v221 = vlaneseq
  %v222 = vshrl.u32 %v221, 7
  %v223 = vsub.s32 0, %v222
  %v224 = vrot.slane %v211, %v223
  %v225 = vmul.f32 %v215, %v220
  %v226 = vmul.f32 %v215, %v224
  %228 = vset.pattern.permute.xlu0 1
  %229 = vperm.xlu0 %228, %v168
  %v230 = vpop.permute.xlu0 %229
  %v232 = vlaneseq
  %v233 = vshrl.u32 %v232, 7
  %v234 = vsub.s32 1, %v233
  %v235 = vrot.slane %v210, %v234
  %v236 = vlaneseq
  %v237 = vshrl.u32 %v236, 7
  %v238 = vsub.s32 1, %v237
  %v239 = vrot.slane %v211, %v238
  %v240 = vmul.f32 %v230, %v235
  %v241 = vmul.f32 %v230, %v239
  %v242 = vadd.f32 %v225, %v240
  %v243 = vadd.f32 %v226, %v241
  %245 = vset.pattern.permute.xlu0 2
  %246 = vperm.xlu0 %245, %v200
  %v247 = vpop.permute.xlu0 %246
  %v249 = vlaneseq
  %v250 = vshrl.u32 %v249, 7
  %v251 = vsub.s32 2, %v250
  %v252 = vrot.slane %v210, %v251
  %v253 = vlaneseq
  %v254 = vshrl.u32 %v253, 7
  %v255 = vsub.s32 2, %v254
  %v256 = vrot.slane %v211, %v255
  %v257 = vmul.f32 %v247, %v252
  %v258 = vmul.f32 %v247, %v256
  %260 = vset.pattern.permute.xlu0 3
  %261 = vperm.xlu0 %260, %v205
  %v262 = vpop.permute.xlu0 %261
  %v264 = vlaneseq
  %v265 = vshrl.u32 %v264, 7
  %v266 = vsub.s32 3, %v265
  %v267 = vrot.slane %v210, %v266
  %v268 = vlaneseq
  %v269 = vshrl.u32 %v268, 7
  %v270 = vsub.s32 3, %v269
  %v271 = vrot.slane %v211, %v270
  %v272 = vmul.f32 %v262, %v267
  %v273 = vmul.f32 %v262, %v271
  %v274 = vadd.f32 %v257, %v272
  %v275 = vadd.f32 %v258, %v273
  %277 = vset.pattern.permute.xlu0 4
  %278 = vperm.xlu0 %277, %v209
  %v279 = vpop.permute.xlu0 %278
  %v281 = vlaneseq
  %v282 = vshrl.u32 %v281, 7
  %v283 = vsub.s32 4, %v282
  %v284 = vrot.slane %v210, %v283
  %v285 = vlaneseq
  %v286 = vshrl.u32 %v285, 7
  %v287 = vsub.s32 4, %v286
  %v288 = vrot.slane %v211, %v287
  %v289 = vmul.f32 %v279, %v284
  %v290 = vmul.f32 %v279, %v288
  %v291 = vadd.f32 %v274, %v289
  %v292 = vadd.f32 %v275, %v290
  %v293 = vmul.f32 %v242, %v291
  %v294 = vmul.f32 %v243, %v292
  %v295 = vmul.f32 %v35, %v293
  %v296 = vmul.f32 %v36, %v294
  %v297 = vld [vmem:[%s4] sm:$0xff]
  %v298 = vld [vmem:[%s4 + $0x8] sm:$0xff]
  %v299 = vld [vmem:[%s4 + $0x10] sm:$0xff]
  %v300 = vld [vmem:[%s4 + $0x18] sm:$0xff]
  %v301 = vld [vmem:[%s4 + $0x20] sm:$0xff]
  %v302 = vld [vmem:[%s4 + $0x28] sm:$0xff]
  %v303 = vld [vmem:[%s4 + $0x30] sm:$0xff]
  %v304 = vld [vmem:[%s4 + $0x38] sm:$0xff]
  %v305 = vld [vmem:[%s4 + $0x40] sm:$0xff]
  %v306 = vld [vmem:[%s4 + $0x48] sm:$0xff]
  %v307 = vld [vmem:[%s4 + $0x50] sm:$0xff]
  %v308 = vld [vmem:[%s4 + $0x58] sm:$0xff]
  %v309 = vld [vmem:[%s4 + $0x60] sm:$0xff]
  %v310 = vld [vmem:[%s4 + $0x68] sm:$0xff]
  %v311 = vld [vmem:[%s4 + $0x70] sm:$0xff]
  %v312 = vld [vmem:[%s4 + $0x78] sm:$0xff]
  %v313 = vld [vmem:[%s4 + $0x80] sm:$0xff]
  %v314 = vld [vmem:[%s4 + $0x88] sm:$0xff]
  %v315 = vld [vmem:[%s4 + $0x90] sm:$0xff]
  %v316 = vld [vmem:[%s4 + $0x98] sm:$0xff]
  %v317 = vld [vmem:[%s4 + $0xa0] sm:$0xff]
  %v318 = vld [vmem:[%s4 + $0xa8] sm:$0xff]
  %v319 = vld [vmem:[%s4 + $0xb0] sm:$0xff]
  %v320 = vld [vmem:[%s4 + $0xb8] sm:$0xff]
  %v321 = vld [vmem:[%s5] sm:$0x1]
  %v323 = vlaneseq
  %v324 = vshrl.u32 %v323, 7
  %v325 = vsub.s32 0, %v324
  %v326 = vrot.slane %v321, %v325
  %v329 = vsel %vm68, %v296, 0
  %331 = vmatprep.subr.mxu0 0.0
  %332 = vmatpush1.msra.mxu0 %v297
  %333 = vmatprep.subr.mxu0 0.0
  %334 = vmatpush1.msra.mxu0 %v298
  %335 = vmatprep.subr.mxu0 0.0
  %336 = vmatpush1.msra.mxu0 %v299
  %337 = vmatprep.subr.mxu0 0.0
  %338 = vmatpush1.msra.mxu0 %v300
  %339 = vmatprep.subr.mxu0 0.0
  %340 = vmatpush1.msra.mxu0 %v301
  %341 = vmatprep.subr.mxu0 0.0
  %342 = vmatpush1.msra.mxu0 %v302
  %343 = vmatprep.subr.mxu0 0.0
  %344 = vmatpush1.msra.mxu0 %v303
  %345 = vmatprep.subr.mxu0 0.0
  %346 = vmatpush1.msra.mxu0 %v304
  %347 = vmatprep.subr.mxu0 0.0
  %348 = vmatpush1.msra.mxu0 %v305
  %349 = vmatprep.subr.mxu0 0.0
  %350 = vmatpush1.msra.mxu0 %v306
  %351 = vmatprep.subr.mxu0 0.0
  %352 = vmatpush1.msra.mxu0 %v307
  %353 = vmatprep.subr.mxu0 0.0
  %354 = vmatpush1.msra.mxu0 %v308
  %355 = vmatprep.subr.mxu0 0.0
  %356 = vmatpush1.msra.mxu0 %v309
  %357 = vmatprep.subr.mxu0 0.0
  %358 = vmatpush1.msra.mxu0 %v310
  %359 = vmatprep.subr.mxu0 0.0
  %360 = vmatpush1.msra.mxu0 %v311
  %361 = vmatprep.subr.mxu0 0.0
  %362 = vmatpush1.msra.mxu0 %v312
  %363 = vmatprep.subr.mxu0 0.0
  %364 = vmatpush1.msra.mxu0 %v313
  %365 = vmatprep.subr.mxu0 0.0
  %366 = vmatpush1.msra.mxu0 %v314
  %367 = vmatprep.subr.mxu0 0.0
  %368 = vmatpush1.msra.mxu0 %v315
  %369 = vmatprep.subr.mxu0 0.0
  %370 = vmatpush1.msra.mxu0 %v316
  %371 = vmatprep.subr.mxu0 0.0
  %372 = vmatpush1.msra.mxu0 %v317
  %373 = vmatprep.subr.mxu0 0.0
  %374 = vmatpush1.msra.mxu0 %v318
  %375 = vmatprep.subr.mxu0 0.0
  %376 = vmatpush1.msra.mxu0 %v319
  %377 = vmatprep.subr.mxu0 0.0
  %378 = vmatpush1.msra.mxu0 %v320
  %379 = vmatprep.subr.mxu0 0.0
  %380 = vmatpush1.msra.mxu0 0.0
  %381 = vmatprep.subr.mxu0 0.0
  %382 = vmatpush1.msra.mxu0 0.0
  %383 = vmatprep.subr.mxu0 0.0
  %384 = vmatpush1.msra.mxu0 0.0
  %385 = vmatprep.subr.mxu0 0.0
  %386 = vmatpush1.msra.mxu0 0.0
  %387 = vmatprep.subr.mxu0 0.0
  %388 = vmatpush1.msra.mxu0 0.0
  %389 = vmatprep.subr.mxu0 0.0
  %390 = vmatpush1.msra.mxu0 0.0
  %391 = vmatprep.subr.mxu0 0.0
  %392 = vmatpush1.msra.mxu0 0.0
  %393 = vmatprep.subr.mxu0 0.0
  %394 = vmatpush1.msra.mxu0 0.0
  %395 = vmatprep.mubr.f32.mxu0 %v329
  %396 = vmatmul.mubr.f32.gmra.mrb[0].mxu0 %v295
  %v397 = vpop.f32.mrb[0].mxu0
  %v398 = vadd.f32 %v326, %v397
  %v399 = vpop.f32.mrb[0].mxu0
  %400 = vdwg.mxu0
  %v401 = vmax.f32 %v398, 0.0
  %v402 = vld [vmem:[%s6] sm:$0xff]
  %v403 = vld [vmem:[%s6 + $0x8] sm:$0xff]
  %v404 = vld [vmem:[%s6 + $0x10] sm:$0xff]
  %v405 = vld [vmem:[%s6 + $0x18] sm:$0xff]
  %v406 = vld [vmem:[%s6 + $0x20] sm:$0xff]
  %v407 = vld [vmem:[%s6 + $0x28] sm:$0xff]
  %v408 = vld [vmem:[%s6 + $0x30] sm:$0xff]
  %v409 = vld [vmem:[%s6 + $0x38] sm:$0xff]
  %v410 = vld [vmem:[%s6 + $0x40] sm:$0xff]
  %v411 = vld [vmem:[%s6 + $0x48] sm:$0xff]
  %v412 = vld [vmem:[%s6 + $0x50] sm:$0xff]
  %v413 = vld [vmem:[%s6 + $0x58] sm:$0xff]
  %v414 = vld [vmem:[%s6 + $0x60] sm:$0xff]
  %v415 = vld [vmem:[%s6 + $0x68] sm:$0xff]
  %v416 = vld [vmem:[%s6 + $0x70] sm:$0xff]
  %v417 = vld [vmem:[%s6 + $0x78] sm:$0xff]
  %v418 = vld [vmem:[%s7] sm:$0x1]
  %v420 = vlaneseq
  %v421 = vshrl.u32 %v420, 7
  %v422 = vsub.s32 0, %v421
  %v423 = vrot.slane %v418, %v422
  %425 = vmatprep.subr.mxu0 0.0
  %426 = vmatpush1.msra.mxu0 %v402
  %427 = vmatprep.subr.mxu0 0.0
  %428 = vmatpush1.msra.mxu0 %v403
  %429 = vmatprep.subr.mxu0 0.0
  %430 = vmatpush1.msra.mxu0 %v404
  %431 = vmatprep.subr.mxu0 0.0
  %432 = vmatpush1.msra.mxu0 %v405
  %433 = vmatprep.subr.mxu0 0.0
  %434 = vmatpush1.msra.mxu0 %v406
  %435 = vmatprep.subr.mxu0 0.0
  %436 = vmatpush1.msra.mxu0 %v407
  %437 = vmatprep.subr.mxu0 0.0
  %438 = vmatpush1.msra.mxu0 %v408
  %439 = vmatprep.subr.mxu0 0.0
  %440 = vmatpush1.msra.mxu0 %v409
  %441 = vmatprep.subr.mxu0 0.0
  %442 = vmatpush1.msra.mxu0 %v410
  %443 = vmatprep.subr.mxu0 0.0
  %444 = vmatpush1.msra.mxu0 %v411
  %445 = vmatprep.subr.mxu0 0.0
  %446 = vmatpush1.msra.mxu0 %v412
  %447 = vmatprep.subr.mxu0 0.0
  %448 = vmatpush1.msra.mxu0 %v413
  %449 = vmatprep.subr.mxu0 0.0
  %450 = vmatpush1.msra.mxu0 %v414
  %451 = vmatprep.subr.mxu0 0.0
  %452 = vmatpush1.msra.mxu0 %v415
  %453 = vmatprep.subr.mxu0 0.0
  %454 = vmatpush1.msra.mxu0 %v416
  %455 = vmatprep.subr.mxu0 0.0
  %456 = vmatpush1.msra.mxu0 %v417
  %457 = vmatprep.subr.mxu0 0.0
  %458 = vmatpush1.msra.mxu0 0.0
  %459 = vmatprep.subr.mxu0 0.0
  %460 = vmatpush1.msra.mxu0 0.0
  %461 = vmatprep.subr.mxu0 0.0
  %462 = vmatpush1.msra.mxu0 0.0
  %463 = vmatprep.subr.mxu0 0.0
  %464 = vmatpush1.msra.mxu0 0.0
  %465 = vmatprep.subr.mxu0 0.0
  %466 = vmatpush1.msra.mxu0 0.0
  %467 = vmatprep.subr.mxu0 0.0
  %468 = vmatpush1.msra.mxu0 0.0
  %469 = vmatprep.subr.mxu0 0.0
  %470 = vmatpush1.msra.mxu0 0.0
  %471 = vmatprep.subr.mxu0 0.0
  %472 = vmatpush1.msra.mxu0 0.0
  %473 = vmatprep.subr.mxu0 0.0
  %474 = vmatpush1.msra.mxu0 0.0
  %475 = vmatprep.subr.mxu0 0.0
  %476 = vmatpush1.msra.mxu0 0.0
  %477 = vmatprep.subr.mxu0 0.0
  %478 = vmatpush1.msra.mxu0 0.0
  %479 = vmatprep.subr.mxu0 0.0
  %480 = vmatpush1.msra.mxu0 0.0
  %481 = vmatprep.subr.mxu0 0.0
  %482 = vmatpush1.msra.mxu0 0.0
  %483 = vmatprep.subr.mxu0 0.0
  %484 = vmatpush1.msra.mxu0 0.0
  %485 = vmatprep.subr.mxu0 0.0
  %486 = vmatpush1.msra.mxu0 0.0
  %487 = vmatprep.subr.mxu0 0.0
  %488 = vmatpush1.msra.mxu0 0.0
  %489 = vmatprep.mubr.f32.mxu0 0.0
  %490 = vmatmul.mubr.f32.gmra.mrb[0].mxu0 %v401
  %v491 = vpop.f32.mrb[0].mxu0
  %v492 = vadd.f32 %v423, %v491
  %v493 = vpop.f32.mrb[0].mxu0
  %494 = vdwg.mxu0
  %v495 = vxor.u32 %v492, 2147483648
  %v496 = vmul.f32 %v495, 1.442695
  %v497 = vpow.pop %v496
  %v498 = vadd.f32 %v497, 1.0
  %v499 = vrcp.pop %v498
  %v500 = vmul.f32 1.0, %v499
  %v501 = vld [vmem:[%s8] sm:$0xff]
  %v502 = vld [vmem:[%s8 + $0x8] sm:$0xff]
  %v503 = vld [vmem:[%s8 + $0x10] sm:$0xff]
  %v504 = vld [vmem:[%s8 + $0x18] sm:$0xff]
  %v505 = vld [vmem:[%s8 + $0x20] sm:$0xff]
  %v506 = vld [vmem:[%s8 + $0x28] sm:$0xff]
  %v507 = vld [vmem:[%s8 + $0x30] sm:$0xff]
  %v508 = vld [vmem:[%s8 + $0x38] sm:$0xff]
  %v509 = vld [vmem:[%s8 + $0x40] sm:$0xff]
  %v510 = vld [vmem:[%s8 + $0x48] sm:$0xff]
  %v511 = vld [vmem:[%s8 + $0x50] sm:$0xff]
  %v512 = vld [vmem:[%s8 + $0x58] sm:$0xff]
  %v513 = vld [vmem:[%s8 + $0x60] sm:$0xff]
  %v514 = vld [vmem:[%s8 + $0x68] sm:$0xff]
  %v515 = vld [vmem:[%s8 + $0x70] sm:$0xff]
  %v516 = vld [vmem:[%s8 + $0x78] sm:$0xff]
  %v517 = vld [vmem:[%s9] sm:$0x1]
  %v519 = vlaneseq
  %v520 = vshrl.u32 %v519, 7
  %v521 = vsub.s32 0, %v520
  %v522 = vrot.slane %v517, %v521
  %524 = vmatprep.subr.mxu0 0.0
  %525 = vmatpush1.msra.mxu0 %v501
  %526 = vmatprep.subr.mxu0 0.0
  %527 = vmatpush1.msra.mxu0 %v502
  %528 = vmatprep.subr.mxu0 0.0
  %529 = vmatpush1.msra.mxu0 %v503
  %530 = vmatprep.subr.mxu0 0.0
  %531 = vmatpush1.msra.mxu0 %v504
  %532 = vmatprep.subr.mxu0 0.0
  %533 = vmatpush1.msra.mxu0 %v505
  %534 = vmatprep.subr.mxu0 0.0
  %535 = vmatpush1.msra.mxu0 %v506
  %536 = vmatprep.subr.mxu0 0.0
  %537 = vmatpush1.msra.mxu0 %v507
  %538 = vmatprep.subr.mxu0 0.0
  %539 = vmatpush1.msra.mxu0 %v508
  %540 = vmatprep.subr.mxu0 0.0
  %541 = vmatpush1.msra.mxu0 %v509
  %542 = vmatprep.subr.mxu0 0.0
  %543 = vmatpush1.msra.mxu0 %v510
  %544 = vmatprep.subr.mxu0 0.0
  %545 = vmatpush1.msra.mxu0 %v511
  %546 = vmatprep.subr.mxu0 0.0
  %547 = vmatpush1.msra.mxu0 %v512
  %548 = vmatprep.subr.mxu0 0.0
  %549 = vmatpush1.msra.mxu0 %v513
  %550 = vmatprep.subr.mxu0 0.0
  %551 = vmatpush1.msra.mxu0 %v514
  %552 = vmatprep.subr.mxu0 0.0
  %553 = vmatpush1.msra.mxu0 %v515
  %554 = vmatprep.subr.mxu0 0.0
  %555 = vmatpush1.msra.mxu0 %v516
  %556 = vmatprep.subr.mxu0 0.0
  %557 = vmatpush1.msra.mxu0 0.0
  %558 = vmatprep.subr.mxu0 0.0
  %559 = vmatpush1.msra.mxu0 0.0
  %560 = vmatprep.subr.mxu0 0.0
  %561 = vmatpush1.msra.mxu0 0.0
  %562 = vmatprep.subr.mxu0 0.0
  %563 = vmatpush1.msra.mxu0 0.0
  %564 = vmatprep.subr.mxu0 0.0
  %565 = vmatpush1.msra.mxu0 0.0
  %566 = vmatprep.subr.mxu0 0.0
  %567 = vmatpush1.msra.mxu0 0.0
  %568 = vmatprep.subr.mxu0 0.0
  %569 = vmatpush1.msra.mxu0 0.0
  %570 = vmatprep.subr.mxu0 0.0
  %571 = vmatpush1.msra.mxu0 0.0
  %572 = vmatprep.subr.mxu0 0.0
  %573 = vmatpush1.msra.mxu0 0.0
  %574 = vmatprep.subr.mxu0 0.0
  %575 = vmatpush1.msra.mxu0 0.0
  %576 = vmatprep.subr.mxu0 0.0
  %577 = vmatpush1.msra.mxu0 0.0
  %578 = vmatprep.subr.mxu0 0.0
  %579 = vmatpush1.msra.mxu0 0.0
  %580 = vmatprep.subr.mxu0 0.0
  %581 = vmatpush1.msra.mxu0 0.0
  %582 = vmatprep.subr.mxu0 0.0
  %583 = vmatpush1.msra.mxu0 0.0
  %584 = vmatprep.subr.mxu0 0.0
  %585 = vmatpush1.msra.mxu0 0.0
  %586 = vmatprep.subr.mxu0 0.0
  %587 = vmatpush1.msra.mxu0 0.0
  %588 = vmatprep.mubr.f32.mxu0 0.0
  %589 = vmatmul.mubr.f32.gmra.mrb[0].mxu0 %v500
  %v590 = vpop.f32.mrb[0].mxu0
  %v591 = vadd.f32 %v522, %v590
  %v592 = vpop.f32.mrb[0].mxu0
  %593 = vdwg.mxu0
  %594 = vst [vmem:[%s10] sm:$0xff] %v591
  // Predicated region
  $region42: #{predictor_forward.1} parent=0 // pred_check
    _
  $region43: #{predictor_forward.1} parent=0 // pred_check_branch
    %596 = sbr.rel (0) target = $region45
  $region44: #{predictor_forward.1} parent=0 // pred_region
    _
  $region45: #{predictor_forward.1} parent=0 // pred_fallthru
    _
  // Predicated region
  $region46: #{predictor_forward.1} parent=0 // pred_check
    _
  $region47: #{predictor_forward.1} parent=0 // pred_check_branch
    %598 = sbr.rel (0) target = $region49
  $region48: #{predictor_forward.1} parent=0 // pred_region
    _
  $region49: #{predictor_forward.1} parent=0 // pred_fallthru
    _

</llo_original>
